<compile_context>
chip_gen: v7x
topology: tpu7x:2x2x1
jax: 0.10.0
libtpu: 0.0.40
codegen_flags: <defaults>
</compile_context>

<pallas_src>
import jax
import jax.numpy as jnp
from jax import lax
from jax.experimental import pallas as pl
from jax.experimental.pallas import tpu as pltpu

LANES = 128
SUBLANES = 8
NUM_CORE_SPLITS = 2   # leading "parallel" grid axis -> megacore split on v7x


def _make_kernel(*, n_elems, block_rows, block_elems, steps_per_core,
                 inv_n, inv_b, real_w, fake_w, adv_w):
    """Fused hinge-GAN loss kernel with all static constants baked in."""

    def kernel(real_ref, fake_ref, faked_ref, out_ref, acc_r, acc_k, acc_f):
        c = pl.program_id(0)                 # core-split index (parallel)
        i = pl.program_id(1)                 # reduction step (arbitrary)
        pid = c * steps_per_core + i         # logical (unclamped) block id

        @pl.when(i == 0)
        def _init():
            acc_r[...] = jnp.zeros_like(acc_r)
            acc_k[...] = jnp.zeros_like(acc_k)
            acc_f[...] = jnp.zeros_like(acc_f)

        # In-kernel cast: accept native (e.g. bf16) logits, do all math in f32.
        real = real_ref[...].astype(jnp.float32)
        fake = fake_ref[...].astype(jnp.float32)
        faked = faked_ref[...].astype(jnp.float32)

        t_real = jnp.maximum(1.0 - real, 0.0)     # relu(1 - D(real))
        t_faked = jnp.maximum(1.0 + faked, 0.0)   # relu(1 + D(fake.detach()))
        t_fake = fake                             # summed for -mean(D(fake))

        # Only blocks that extend past the true element count pay for masking.
        is_tail = (pid + 1) * block_elems > n_elems

        @pl.when(jnp.logical_not(is_tail))
        def _full_block():
            acc_r[...] += t_real
            acc_k[...] += t_faked
            acc_f[...] += t_fake

        @pl.when(is_tail)
        def _tail_block():
            row = lax.broadcasted_iota(jnp.int32, (block_rows, LANES), 0)
            lane = lax.broadcasted_iota(jnp.int32, (block_rows, LANES), 1)
            idx = pid * block_elems + row * LANES + lane
            valid = idx < n_elems
            acc_r[...] += jnp.where(valid, t_real, 0.0)
            acc_k[...] += jnp.where(valid, t_faked, 0.0)
            acc_f[...] += jnp.where(valid, t_fake, 0.0)

        @pl.when(i == pl.num_programs(1) - 1)
        def _finalize():
            real_l = real_w * (jnp.sum(acc_r[...]) * inv_n)
            fake_l = fake_w * (jnp.sum(acc_k[...]) * inv_n)
            adv_l = adv_w * (-(jnp.sum(acc_f[...]) * inv_n))
            total = (real_l + fake_l + adv_l) * inv_b
            lane = lax.broadcasted_iota(jnp.int32, (1, SUBLANES, LANES), 2)
            out_ref[...] = (jnp.where(lane == 0, total, 0.0)
                            + jnp.where(lane == 1, real_l, 0.0)
                            + jnp.where(lane == 2, fake_l, 0.0)
                            + jnp.where(lane == 3, adv_l, 0.0))

    return kernel


def _as_lane_rows(x):
    """Flatten to lane-dense (rows, 128) rows in the NATIVE dtype (no astype)."""
    flat = jnp.ravel(x)                      # free reshape for contiguous inputs
    rem = flat.shape[0] % LANES
    if rem:
        # TODO(synk): numel not a multiple of 128 forces one small host-side pad
        # copy; pad values are irrelevant because the kernel masks by element id.
        flat = jnp.pad(flat, (0, LANES - rem))
    return flat.reshape(-1, LANES)


def gan_hinge_loss(real_outputs, fake_outputs, faked_outputs, *,
                   real_weight, fake_weight, adversarial_weight,
                   max_block_rows=2048):
    """Fused Pallas implementation of the GANLoss reduction given discriminator logits."""
    assert real_outputs.shape == fake_outputs.shape == faked_outputs.shape
    n_elems = int(real_outputs.size)
    batch = int(real_outputs.shape[0])       # torch len(tensor) == size(0)

    real2d = _as_lane_rows(real_outputs)
    fake2d = _as_lane_rows(fake_outputs)
    faked2d = _as_lane_rows(faked_outputs)
    rows_total = real2d.shape[0]

    # Row tile: multiple of 8 sublanes (or the full array when tiny); large
    # enough to amortize per-step overhead at v7x HBM bandwidth while keeping
    # 3 inputs x 2 buffers + 3 accumulators ~10 MiB of VMEM.
    if rows_total <= SUBLANES:
        block_rows = rows_total
    else:
        block_rows = min(max_block_rows, rows_total)
        block_rows -= block_rows % SUBLANES
    block_elems = block_rows * LANES
    total_blocks = -(-rows_total // block_rows)
    steps_per_core = -(-total_blocks // NUM_CORE_SPLITS)
    last_block = total_blocks - 1

    kernel = _make_kernel(
        n_elems=n_elems, block_rows=block_rows, block_elems=block_elems,
        steps_per_core=steps_per_core,
        inv_n=1.0 / float(n_elems), inv_b=1.0 / float(batch),
        real_w=float(real_weight), fake_w=float(fake_weight),
        adv_w=float(adversarial_weight))

    def in_index_map(c, i):
        # Clamp so the DMA window never starts past the array; fully-out-of-
        # range logical blocks are masked to zero contribution inside the kernel.
        return (jnp.minimum(c * steps_per_core + i, last_block), 0)

    in_spec = pl.BlockSpec((block_rows, LANES), in_index_map)
    itemsize = jnp.dtype(real_outputs.dtype).itemsize

    out = pl.pallas_call(
        kernel,
        out_shape=jax.ShapeDtypeStruct((NUM_CORE_SPLITS, SUBLANES, LANES),
                                       jnp.float32),
        grid_spec=pltpu.PrefetchScalarGridSpec(
            num_scalar_prefetch=0,
            grid=(NUM_CORE_SPLITS, steps_per_core),
            in_specs=[in_spec, in_spec, in_spec],
            out_specs=pl.BlockSpec((1, SUBLANES, LANES), lambda c, i: (c, 0, 0)),
            scratch_shapes=[
                pltpu.VMEM((block_rows, LANES), jnp.float32),
                pltpu.VMEM((block_rows, LANES), jnp.float32),
                pltpu.VMEM((block_rows, LANES), jnp.float32),
            ],
        ),
        compiler_params=pltpu.CompilerParams(
            dimension_semantics=("parallel", "arbitrary"),
            vmem_limit_bytes=32 * 1024 * 1024,
        ),
        cost_estimate=pl.CostEstimate(
            flops=9 * n_elems,
            transcendentals=0,
            bytes_accessed=3 * n_elems * itemsize
                           + NUM_CORE_SPLITS * SUBLANES * LANES * 4,
        ),
    )(real2d, fake2d, faked2d)

    # Combine the per-core partial losses (tiny XLA add over 8 floats).
    vals = jnp.sum(out[:, 0, :4], axis=0)
    return vals[0], {
        'real_loss': vals[1],
        'fake_loss': vals[2],
        'adversarial_loss': vals[3],
    }


class GANLoss:
    """Mirror of the PyTorch module's configuration; the discriminator stays external."""

    def __init__(self, config):
        w = config['weights']['gan']
        self.real_weight = w['real']
        self.fake_weight = w['fake']
        self.adversarial_weight = w['adversarial']
        self.feature_matching_weight = w['feature_matching']  # unused in forward (as in PyTorch)

    def __call__(self, real_outputs, fake_outputs, faked_outputs):
        return gan_hinge_loss(
            real_outputs, fake_outputs, faked_outputs,
            real_weight=self.real_weight,
            fake_weight=self.fake_weight,
            adversarial_weight=self.adversarial_weight,
        )


def _reference(real_out, fake_out, faked_out, cfg):
    w = cfg['weights']['gan']
    real_out = real_out.astype(jnp.float32)
    fake_out = fake_out.astype(jnp.float32)
    faked_out = faked_out.astype(jnp.float32)
    adv = -jnp.mean(fake_out) * w['adversarial']
    real = jnp.mean(jax.nn.relu(1.0 - real_out)) * w['real']
    fake = jnp.mean(jax.nn.relu(1.0 + faked_out)) * w['fake']
    total = (real + fake + adv) / real_out.shape[0]
    return total, real, fake, adv


if __name__ == "__main__":
    key = jax.random.PRNGKey(0)
    keys = jax.random.split(key, 6)

    config = {'weights': {'gan': {'real': 1.0, 'fake': 1.0,
                                  'adversarial': 0.1, 'feature_matching': 10.0}}}
    loss_fn = GANLoss(config)

    # Check 1: PatchGAN-style f32 logit maps, batch=2, 1x16x16 (numel % 128 == 0,
    # no host-side copies at all).
    shape1 = (2, 1, 16, 16)
    r1 = jax.random.normal(keys[0], shape1, dtype=jnp.float32)
    f1 = jax.random.normal(keys[1], shape1, dtype=jnp.float32)
    fd1 = jax.random.normal(keys[2], shape1, dtype=jnp.float32)

    total1, parts1 = loss_fn(r1, f1, fd1)
    total1 = jax.block_until_ready(total1)
    ref_t, ref_r, ref_f, ref_a = _reference(r1, f1, fd1, config)
    assert jnp.allclose(total1, ref_t, atol=1e-5, rtol=1e-5)
    assert jnp.allclose(parts1['real_loss'], ref_r, atol=1e-5, rtol=1e-5)
    assert jnp.allclose(parts1['fake_loss'], ref_f, atol=1e-5, rtol=1e-5)
    assert jnp.allclose(parts1['adversarial_loss'], ref_a, atol=1e-5, rtol=1e-5)

    # Check 2: bf16 logits with a non-128-multiple element count — exercises
    # the in-kernel cast, the masked tail block and both core-split partials.
    shape2 = (2, 3, 16, 23)
    r2 = jax.random.normal(keys[3], shape2, dtype=jnp.float32).astype(jnp.bfloat16)
    f2 = jax.random.normal(keys[4], shape2, dtype=jnp.float32).astype(jnp.bfloat16)
    fd2 = jax.random.normal(keys[5], shape2, dtype=jnp.float32).astype(jnp.bfloat16)

    total2, parts2 = loss_fn(r2, f2, fd2)
    total2 = jax.block_until_ready(total2)
    ref_t2, ref_r2, ref_f2, ref_a2 = _reference(r2, f2, fd2, config)
    assert jnp.allclose(total2, ref_t2, atol=1e-5, rtol=1e-4)
    assert jnp.allclose(parts2['real_loss'], ref_r2, atol=1e-5, rtol=1e-4)
    assert jnp.allclose(parts2['fake_loss'], ref_f2, atol=1e-5, rtol=1e-4)
    assert jnp.allclose(parts2['adversarial_loss'], ref_a2, atol=1e-5, rtol=1e-4)

    print("KERNEL_OK")
</pallas_src>

<mosaic_0001>
module attributes {stable_mosaic.version = 11 : i64} {
  func.func @kernel(%arg0: i32, %arg1: i32, %arg2: memref<4x128xf32, #tpu.memory_space<vmem>>, %arg3: memref<4x128xf32, #tpu.memory_space<vmem>>, %arg4: memref<4x128xf32, #tpu.memory_space<vmem>>, %arg5: memref<1x8x128xf32, #tpu.memory_space<vmem>>, %arg6: memref<4x128xf32, #tpu.memory_space<vmem>>, %arg7: memref<4x128xf32, #tpu.memory_space<vmem>>, %arg8: memref<4x128xf32, #tpu.memory_space<vmem>>) attributes {dimension_semantics = [#tpu.dimension_semantics<parallel>, #tpu.dimension_semantics<arbitrary>], iteration_bounds = array<i64: 2, 1>, scalar_prefetch = 0 : i64, scratch_operands = 3 : i64, tpu.core_type = #tpu.core_type<tc>, window_params = [{transform_indices = @transform_0, window_bounds = array<i64: 4, 128>}, {transform_indices = @transform_1, window_bounds = array<i64: 4, 128>}, {transform_indices = @transform_2, window_bounds = array<i64: 4, 128>}, {transform_indices = @transform_3, window_bounds = array<i64: 1, 8, 128>}]} {
    %c1_i32 = arith.constant 1 : i32
    %0 = arith.muli %arg0, %c1_i32 : i32
    %1 = arith.addi %0, %arg1 : i32
    %c0_i32 = arith.constant 0 : i32
    %2 = arith.cmpi eq, %arg1, %c0_i32 : i32
    %3 = arith.extui %2 : i1 to i32
    %c0_i32_0 = arith.constant 0 : i32
    %4 = arith.cmpi ne, %3, %c0_i32_0 : i32
    scf.if %4 {
      %cst_15 = arith.constant 0.000000e+00 : f32
      %27 = vector.broadcast %cst_15 : f32 to vector<4x128xf32>
      %c0_16 = arith.constant 0 : index
      %c0_17 = arith.constant 0 : index
      %28 = vector.load %arg6[%c0_16, %c0_17] : memref<4x128xf32, #tpu.memory_space<vmem>>, vector<4x128xf32>
      tpu.vector_store %arg6[%c0_16, %c0_17], %27 {strides = array<i32>} : memref<4x128xf32, #tpu.memory_space<vmem>>, vector<4x128xf32>,
      %cst_18 = arith.constant 0.000000e+00 : f32
      %29 = vector.broadcast %cst_18 : f32 to vector<4x128xf32>
      %c0_19 = arith.constant 0 : index
      %c0_20 = arith.constant 0 : index
      %30 = vector.load %arg7[%c0_19, %c0_20] : memref<4x128xf32, #tpu.memory_space<vmem>>, vector<4x128xf32>
      tpu.vector_store %arg7[%c0_19, %c0_20], %29 {strides = array<i32>} : memref<4x128xf32, #tpu.memory_space<vmem>>, vector<4x128xf32>,
      %cst_21 = arith.constant 0.000000e+00 : f32
      %31 = vector.broadcast %cst_21 : f32 to vector<4x128xf32>
      %c0_22 = arith.constant 0 : index
      %c0_23 = arith.constant 0 : index
      %32 = vector.load %arg8[%c0_22, %c0_23] : memref<4x128xf32, #tpu.memory_space<vmem>>, vector<4x128xf32>
      tpu.vector_store %arg8[%c0_22, %c0_23], %31 {strides = array<i32>} : memref<4x128xf32, #tpu.memory_space<vmem>>, vector<4x128xf32>,
    } else {
    }
    %c0 = arith.constant 0 : index
    %c0_1 = arith.constant 0 : index
    %5 = vector.load %arg2[%c0, %c0_1] : memref<4x128xf32, #tpu.memory_space<vmem>>, vector<4x128xf32>
    %c0_2 = arith.constant 0 : index
    %c0_3 = arith.constant 0 : index
    %6 = vector.load %arg3[%c0_2, %c0_3] : memref<4x128xf32, #tpu.memory_space<vmem>>, vector<4x128xf32>
    %c0_4 = arith.constant 0 : index
    %c0_5 = arith.constant 0 : index
    %7 = vector.load %arg4[%c0_4, %c0_5] : memref<4x128xf32, #tpu.memory_space<vmem>>, vector<4x128xf32>
    %cst = arith.constant 1.000000e+00 : f32
    %8 = vector.broadcast %cst : f32 to vector<4x128xf32>
    %9 = arith.subf %8, %5 : vector<4x128xf32>
    %cst_6 = arith.constant 0.000000e+00 : f32
    %10 = vector.broadcast %cst_6 : f32 to vector<4x128xf32>
    %11 = arith.maximumf %9, %10 : vector<4x128xf32>
    %cst_7 = arith.constant 1.000000e+00 : f32
    %12 = vector.broadcast %cst_7 : f32 to vector<4x128xf32>
    %13 = arith.addf %12, %7 : vector<4x128xf32>
    %cst_8 = arith.constant 0.000000e+00 : f32
    %14 = vector.broadcast %cst_8 : f32 to vector<4x128xf32>
    %15 = arith.maximumf %13, %14 : vector<4x128xf32>
    %c1_i32_9 = arith.constant 1 : i32
    %16 = arith.addi %1, %c1_i32_9 : i32
    %c512_i32 = arith.constant 512 : i32
    %17 = arith.muli %16, %c512_i32 : i32
    %c512_i32_10 = arith.constant 512 : i32
    %18 = arith.cmpi sgt, %17, %c512_i32_10 : i32
    %true = arith.constant true
    %19 = arith.xori %18, %true : i1
    %20 = arith.extui %19 : i1 to i32
    %c0_i32_11 = arith.constant 0 : i32
    %21 = arith.cmpi ne, %20, %c0_i32_11 : i32
    scf.if %21 {
      %c0_15 = arith.constant 0 : index
      %c0_16 = arith.constant 0 : index
      %27 = vector.load %arg6[%c0_15, %c0_16] : memref<4x128xf32, #tpu.memory_space<vmem>>, vector<4x128xf32>
      %28 = arith.addf %27, %11 : vector<4x128xf32>
      %c0_17 = arith.constant 0 : index
      %c0_18 = arith.constant 0 : index
      %29 = vector.load %arg6[%c0_17, %c0_18] : memref<4x128xf32, #tpu.memory_space<vmem>>, vector<4x128xf32>
      tpu.vector_store %arg6[%c0_17, %c0_18], %28 {strides = array<i32>} : memref<4x128xf32, #tpu.memory_space<vmem>>, vector<4x128xf32>,
      %c0_19 = arith.constant 0 : index
      %c0_20 = arith.constant 0 : index
      %30 = vector.load %arg7[%c0_19, %c0_20] : memref<4x128xf32, #tpu.memory_space<vmem>>, vector<4x128xf32>
      %31 = arith.addf %30, %15 : vector<4x128xf32>
      %c0_21 = arith.constant 0 : index
      %c0_22 = arith.constant 0 : index
      %32 = vector.load %arg7[%c0_21, %c0_22] : memref<4x128xf32, #tpu.memory_space<vmem>>, vector<4x128xf32>
      tpu.vector_store %arg7[%c0_21, %c0_22], %31 {strides = array<i32>} : memref<4x128xf32, #tpu.memory_space<vmem>>, vector<4x128xf32>,
      %c0_23 = arith.constant 0 : index
      %c0_24 = arith.constant 0 : index
      %33 = vector.load %arg8[%c0_23, %c0_24] : memref<4x128xf32, #tpu.memory_space<vmem>>, vector<4x128xf32>
      %34 = arith.addf %33, %6 : vector<4x128xf32>
      %c0_25 = arith.constant 0 : index
      %c0_26 = arith.constant 0 : index
      %35 = vector.load %arg8[%c0_25, %c0_26] : memref<4x128xf32, #tpu.memory_space<vmem>>, vector<4x128xf32>
      tpu.vector_store %arg8[%c0_25, %c0_26], %34 {strides = array<i32>} : memref<4x128xf32, #tpu.memory_space<vmem>>, vector<4x128xf32>,
    } else {
    }
    %22 = arith.extui %18 : i1 to i32
    %c0_i32_12 = arith.constant 0 : i32
    %23 = arith.cmpi ne, %22, %c0_i32_12 : i32
    scf.if %23 {
      %27 = tpu.iota {dimensions = array<i32: 0>} : vector<4x128xi32>
      %28 = tpu.iota {dimensions = array<i32: 1>} : vector<4x128xi32>
      %c512_i32_15 = arith.constant 512 : i32
      %29 = arith.muli %1, %c512_i32_15 : i32
      %c128_i32 = arith.constant 128 : i32
      %30 = vector.broadcast %c128_i32 : i32 to vector<4x128xi32>
      %31 = arith.muli %27, %30 : vector<4x128xi32>
      %32 = vector.broadcast %29 : i32 to vector<4x128xi32>
      %33 = arith.addi %32, %31 : vector<4x128xi32>
      %34 = arith.addi %33, %28 : vector<4x128xi32>
      %c512_i32_16 = arith.constant 512 : i32
      %35 = vector.broadcast %c512_i32_16 : i32 to vector<4x128xi32>
      %36 = arith.cmpi slt, %34, %35 : vector<4x128xi32>
      %c0_17 = arith.constant 0 : index
      %c0_18 = arith.constant 0 : index
      %37 = vector.load %arg6[%c0_17, %c0_18] : memref<4x128xf32, #tpu.memory_space<vmem>>, vector<4x128xf32>
      %cst_19 = arith.constant 0.000000e+00 : f32
      %38 = vector.broadcast %cst_19 : f32 to vector<4x128xf32>
      %39 = arith.select %36, %11, %38 : vector<4x128xi1>, vector<4x128xf32>
      %40 = arith.addf %37, %39 : vector<4x128xf32>
      %c0_20 = arith.constant 0 : index
      %c0_21 = arith.constant 0 : index
      %41 = vector.load %arg6[%c0_20, %c0_21] : memref<4x128xf32, #tpu.memory_space<vmem>>, vector<4x128xf32>
      tpu.vector_store %arg6[%c0_20, %c0_21], %40 {strides = array<i32>} : memref<4x128xf32, #tpu.memory_space<vmem>>, vector<4x128xf32>,
      %c0_22 = arith.constant 0 : index
      %c0_23 = arith.constant 0 : index
      %42 = vector.load %arg7[%c0_22, %c0_23] : memref<4x128xf32, #tpu.memory_space<vmem>>, vector<4x128xf32>
      %cst_24 = arith.constant 0.000000e+00 : f32
      %43 = vector.broadcast %cst_24 : f32 to vector<4x128xf32>
      %44 = arith.select %36, %15, %43 : vector<4x128xi1>, vector<4x128xf32>
      %45 = arith.addf %42, %44 : vector<4x128xf32>
      %c0_25 = arith.constant 0 : index
      %c0_26 = arith.constant 0 : index
      %46 = vector.load %arg7[%c0_25, %c0_26] : memref<4x128xf32, #tpu.memory_space<vmem>>, vector<4x128xf32>
      tpu.vector_store %arg7[%c0_25, %c0_26], %45 {strides = array<i32>} : memref<4x128xf32, #tpu.memory_space<vmem>>, vector<4x128xf32>,
      %c0_27 = arith.constant 0 : index
      %c0_28 = arith.constant 0 : index
      %47 = vector.load %arg8[%c0_27, %c0_28] : memref<4x128xf32, #tpu.memory_space<vmem>>, vector<4x128xf32>
      %cst_29 = arith.constant 0.000000e+00 : f32
      %48 = vector.broadcast %cst_29 : f32 to vector<4x128xf32>
      %49 = arith.select %36, %6, %48 : vector<4x128xi1>, vector<4x128xf32>
      %50 = arith.addf %47, %49 : vector<4x128xf32>
      %c0_30 = arith.constant 0 : index
      %c0_31 = arith.constant 0 : index
      %51 = vector.load %arg8[%c0_30, %c0_31] : memref<4x128xf32, #tpu.memory_space<vmem>>, vector<4x128xf32>
      tpu.vector_store %arg8[%c0_30, %c0_31], %50 {strides = array<i32>} : memref<4x128xf32, #tpu.memory_space<vmem>>, vector<4x128xf32>,
    } else {
    }
    %c0_i32_13 = arith.constant 0 : i32
    %24 = arith.cmpi eq, %arg1, %c0_i32_13 : i32
    %25 = arith.extui %24 : i1 to i32
    %c0_i32_14 = arith.constant 0 : i32
    %26 = arith.cmpi ne, %25, %c0_i32_14 : i32
    scf.if %26 {
      %c0_15 = arith.constant 0 : index
      %c0_16 = arith.constant 0 : index
      %27 = vector.load %arg6[%c0_15, %c0_16] : memref<4x128xf32, #tpu.memory_space<vmem>>, vector<4x128xf32>
      %28 = vector.shape_cast %27 : vector<4x128xf32> to vector<1x4x128xf32>
      %cst_17 = arith.constant dense<0.000000e+00> : vector<1xf32>
      %29 = vector.multi_reduction <add>, %28, %cst_17 [1, 2] : vector<1x4x128xf32> to vector<1xf32>
      %30 = vector.shape_cast %29 : vector<1xf32> to vector<1x1x1xf32>
      %31 = vector.extract %30[0, 0, 0] : f32 from vector<1x1x1xf32>
      %cst_18 = arith.constant 0.001953125 : f32
      %32 = arith.mulf %31, %cst_18 : f32
      %cst_19 = arith.constant 1.000000e+00 : f32
      %33 = arith.mulf %cst_19, %32 : f32
      %c0_20 = arith.constant 0 : index
      %c0_21 = arith.constant 0 : index
      %34 = vector.load %arg7[%c0_20, %c0_21] : memref<4x128xf32, #tpu.memory_space<vmem>>, vector<4x128xf32>
      %35 = vector.shape_cast %34 : vector<4x128xf32> to vector<1x4x128xf32>
      %cst_22 = arith.constant dense<0.000000e+00> : vector<1xf32>
      %36 = vector.multi_reduction <add>, %35, %cst_22 [1, 2] : vector<1x4x128xf32> to vector<1xf32>
      %37 = vector.shape_cast %36 : vector<1xf32> to vector<1x1x1xf32>
      %38 = vector.extract %37[0, 0, 0] : f32 from vector<1x1x1xf32>
      %cst_23 = arith.constant 0.001953125 : f32
      %39 = arith.mulf %38, %cst_23 : f32
      %cst_24 = arith.constant 1.000000e+00 : f32
      %40 = arith.mulf %cst_24, %39 : f32
      %c0_25 = arith.constant 0 : index
      %c0_26 = arith.constant 0 : index
      %41 = vector.load %arg8[%c0_25, %c0_26] : memref<4x128xf32, #tpu.memory_space<vmem>>, vector<4x128xf32>
      %42 = vector.shape_cast %41 : vector<4x128xf32> to vector<1x4x128xf32>
      %cst_27 = arith.constant dense<0.000000e+00> : vector<1xf32>
      %43 = vector.multi_reduction <add>, %42, %cst_27 [1, 2] : vector<1x4x128xf32> to vector<1xf32>
      %44 = vector.shape_cast %43 : vector<1xf32> to vector<1x1x1xf32>
      %45 = vector.extract %44[0, 0, 0] : f32 from vector<1x1x1xf32>
      %cst_28 = arith.constant 0.001953125 : f32
      %46 = arith.mulf %45, %cst_28 : f32
      %cst_29 = arith.constant 0.000000e+00 : f32
      %47 = arith.subf %cst_29, %46 : f32
      %cst_30 = arith.constant 1.000000e-01 : f32
      %48 = arith.mulf %cst_30, %47 : f32
      %49 = arith.addf %33, %40 : f32
      %50 = arith.addf %49, %48 : f32
      %cst_31 = arith.constant 5.000000e-01 : f32
      %51 = arith.mulf %50, %cst_31 : f32
      %52 = tpu.iota {dimensions = array<i32: 2>} : vector<1x8x128xi32>
      %c0_i32_32 = arith.constant 0 : i32
      %53 = vector.broadcast %c0_i32_32 : i32 to vector<1x8x128xi32>
      %54 = arith.cmpi eq, %52, %53 : vector<1x8x128xi32>
      %cst_33 = arith.constant 0.000000e+00 : f32
      %55 = vector.broadcast %51 : f32 to vector<1x8x128xf32>
      %56 = vector.broadcast %cst_33 : f32 to vector<1x8x128xf32>
      %57 = arith.select %54, %55, %56 : vector<1x8x128xi1>, vector<1x8x128xf32>
      %c1_i32_34 = arith.constant 1 : i32
      %58 = vector.broadcast %c1_i32_34 : i32 to vector<1x8x128xi32>
      %59 = arith.cmpi eq, %52, %58 : vector<1x8x128xi32>
      %cst_35 = arith.constant 0.000000e+00 : f32
      %60 = vector.broadcast %33 : f32 to vector<1x8x128xf32>
      %61 = vector.broadcast %cst_35 : f32 to vector<1x8x128xf32>
      %62 = arith.select %59, %60, %61 : vector<1x8x128xi1>, vector<1x8x128xf32>
      %63 = arith.addf %57, %62 : vector<1x8x128xf32>
      %c2_i32 = arith.constant 2 : i32
      %64 = vector.broadcast %c2_i32 : i32 to vector<1x8x128xi32>
      %65 = arith.cmpi eq, %52, %64 : vector<1x8x128xi32>
      %cst_36 = arith.constant 0.000000e+00 : f32
      %66 = vector.broadcast %40 : f32 to vector<1x8x128xf32>
      %67 = vector.broadcast %cst_36 : f32 to vector<1x8x128xf32>
      %68 = arith.select %65, %66, %67 : vector<1x8x128xi1>, vector<1x8x128xf32>
      %69 = arith.addf %63, %68 : vector<1x8x128xf32>
      %c3_i32 = arith.constant 3 : i32
      %70 = vector.broadcast %c3_i32 : i32 to vector<1x8x128xi32>
      %71 = arith.cmpi eq, %52, %70 : vector<1x8x128xi32>
      %cst_37 = arith.constant 0.000000e+00 : f32
      %72 = vector.broadcast %48 : f32 to vector<1x8x128xf32>
      %73 = vector.broadcast %cst_37 : f32 to vector<1x8x128xf32>
      %74 = arith.select %71, %72, %73 : vector<1x8x128xi1>, vector<1x8x128xf32>
      %75 = arith.addf %69, %74 : vector<1x8x128xf32>
      %c0_38 = arith.constant 0 : index
      %c0_39 = arith.constant 0 : index
      %c0_40 = arith.constant 0 : index
      %76 = vector.load %arg5[%c0_38, %c0_39, %c0_40] : memref<1x8x128xf32, #tpu.memory_space<vmem>>, vector<1x8x128xf32>
      tpu.vector_store %arg5[%c0_38, %c0_39, %c0_40], %75 {strides = array<i32>} : memref<1x8x128xf32, #tpu.memory_space<vmem>>, vector<1x8x128xf32>,
    } else {
    }
    return
  }
  func.func @transform_0(%arg0: i32, %arg1: i32) -> (i32, i32) {
    %c1_i32 = arith.constant 1 : i32
    %0 = arith.muli %arg0, %c1_i32 : i32
    %1 = arith.addi %0, %arg1 : i32
    %c0_i32 = arith.constant 0 : i32
    %2 = arith.minsi %1, %c0_i32 : i32
    %c0_i32_0 = arith.constant 0 : i32
    %c0_i32_1 = arith.constant 0 : i32
    return %2, %c0_i32_0 : i32, i32
  }
  func.func @transform_1(%arg0: i32, %arg1: i32) -> (i32, i32) {
    %c1_i32 = arith.constant 1 : i32
    %0 = arith.muli %arg0, %c1_i32 : i32
    %1 = arith.addi %0, %arg1 : i32
    %c0_i32 = arith.constant 0 : i32
    %2 = arith.minsi %1, %c0_i32 : i32
    %c0_i32_0 = arith.constant 0 : i32
    %c0_i32_1 = arith.constant 0 : i32
    return %2, %c0_i32_0 : i32, i32
  }
  func.func @transform_2(%arg0: i32, %arg1: i32) -> (i32, i32) {
    %c1_i32 = arith.constant 1 : i32
    %0 = arith.muli %arg0, %c1_i32 : i32
    %1 = arith.addi %0, %arg1 : i32
    %c0_i32 = arith.constant 0 : i32
    %2 = arith.minsi %1, %c0_i32 : i32
    %c0_i32_0 = arith.constant 0 : i32
    %c0_i32_1 = arith.constant 0 : i32
    return %2, %c0_i32_0 : i32, i32
  }
  func.func @transform_3(%arg0: i32, %arg1: i32) -> (i32, i32, i32) {
    %c0_i32 = arith.constant 0 : i32
    %c0_i32_0 = arith.constant 0 : i32
    %c0_i32_1 = arith.constant 0 : i32
    return %arg0, %c0_i32, %c0_i32_0 : i32, i32, i32
  }
}

</mosaic_0001>

<llo_original>
// kernel: tpu_custom_call.1
$region0: #{tpu_custom_call.1}
  #allocation0 [shape = 'u32[]', space=smem, size = 0x4, offset = 0x4, fixed_abs, tag = 'smem constant byte address 0x4 - core index']
  #allocation1 [shape = 'u32[144,128]{1,0:T(1,128)}', space=vmem, size = 0x12000, scoped, tag = 'internal scratch']
  #allocation2 [shape = 'f32[4,128]{1,0:T(4,128)}', space=vmem, size = 0x800, scoped, tag = 'scratch operand']
  #allocation3 [shape = 'f32[4,128]{1,0:T(4,128)}', space=vmem, size = 0x800, scoped, tag = 'scratch operand']
  #allocation4 [shape = 'f32[4,128]{1,0:T(4,128)}', space=vmem, size = 0x800, scoped, tag = 'scratch operand']
  %s0 = inlined_call_operand.hbm [shape: f32[4,128], index: 0, kind: input, shape index: {}]
  %s1 = inlined_call_operand.hbm [shape: f32[4,128], index: 1, kind: input, shape index: {}]
  %s2 = inlined_call_operand.vmem [shape: f32[4,128], index: 2, kind: input, shape index: {}]
  %s3 = inlined_call_operand.hbm [shape: f32[2,8,128], index: 3, kind: output, shape index: {}]
  %s4 = sld [smem:[#allocation0]]
  $region69: #{tpu_custom_call.1} parent=0
    _
  %s6 = ssub.s32 1, %s4
  %s7 = scalar_select 0, %s6, %s4
  $region1: #{tpu_custom_call.1} parent=0
    #allocation5 [shape = 'u8[4096]{0}', space=vmem, size = 0x1000, scoped, tag = 'input window, operand 0']
    #allocation6 [shape = 's32[2]{0}', space=sflag, size = 0x8, scoped, tag = 'scoped memory for tpu_custom_call.1']
    #allocation7 [shape = 's32[2]{0}', space=sflag, size = 0x8, scoped, tag = 'scoped memory for tpu_custom_call.1']
    #allocation8 [shape = 'u8[4096]{0}', space=vmem, size = 0x1000, scoped, tag = 'input window, operand 1']
    #allocation9 [shape = 's32[2]{0}', space=sflag, size = 0x8, scoped, tag = 'scoped memory for tpu_custom_call.1']
    #allocation10 [shape = 'u8[8192]{0}', space=vmem, size = 0x2000, scoped, tag = 'output window, operand 0']
    %8 = vsyncpa [#allocation6], 0
    %s9 = scalar_lea.sflag [#allocation6], 1
    %10 = vsyncpa %s9, 0
    %11 = vsyncpa [#allocation9], 0
    %s12 = scalar_lea.sflag [#allocation9], 1
    %13 = vsyncpa %s12, 0
    %14 = vsyncpa [#allocation7], 0
    %s15 = scalar_lea.sflag [#allocation7], 1
    %16 = vsyncpa %s15, 0
    loop: start=0, step=1, limit=4
    $region2: #{tpu_custom_call.1} parent=1 // loop_pre_header
      _
    $region3: #{tpu_custom_call.1} parent=1 // loop_header
      %s18 = sphi 0, %s22
      %p19 = scmp.ge.s32.totalorder %s18, 4
      %s25 = sphi 0, %s37
      %s26 = sphi 0, %s33
      %s27 = sphi 0, %s25
      %s28 = sphi 0, %s26
      %s29 = sphi 0, %s27
      %s30 = sphi 0, %s28
      %s46 = sphi 0, %s48
      %s49 = sphi 0, %s46
      %s50 = sphi 0, %s49
      %s66 = sphi 0, %s50
      %s78 = sphi 0, %s80
      %s81 = sphi 0, %s78
      %s82 = sphi 0, %s81
      %s98 = sphi 0, %s82
      %s110 = sphi 0, %s112
      %s113 = sphi 0, %s110
      %s114 = sphi 0, %s113
      %s130 = sphi 0, %s114
      %s136 = sphi 0, %s138
      %s139 = sphi 0, %s136
      %s140 = sphi 0, %s139
      %s156 = sphi 0, %s140
    $region4: #{tpu_custom_call.1} parent=1 // loop_header_branch
      %21 = sbr.rel (%p19) target = $region8
    $region5: #{tpu_custom_call.1} parent=1 // loop_body
      %s23 = ssub.s32 %s18, 1
      %s24 = ssub.s32 %s18, 2
      %s31 = sadd.s32 1, %s26
      %p32 = scmp.ge.s32.totalorder %s31, 1
      %s33 = scalar_select %p32, 0, %s31
      %s34 = sadd.s32 1, %s25
      %s35 = scalar_select %p32, %s34, %s25
      %p36 = scmp.ge.s32.totalorder %s35, 2
      %s37 = scalar_select %p36, 0, %s35
      %s38 = sadd.s32 %s25, %s26
      %p39 = scmp.lt.s32.totalorder %s38, 0
      %s40 = scalar_select %p39, %s38, 0
      %s41 = sadd.s32 %s37, %s33
      %p42 = scmp.lt.s32.totalorder %s41, 0
      %s43 = scalar_select %p42, %s41, 0
      %s44 = ssub.s32 %s40, %s43
      %p45 = scmp.eq.s32.totalorder %s44, 0
      %s47 = sadd.s32 %s46, 1
      %s48 = scalar_select %p45, %s46, %s47
      %p51 = pneg %p45
      %p52 = scmp.eq.s32.totalorder %s18, 1
      %p53 = por %p51, %p52
      %p54 = scmp.ne.s32.totalorder %s46, %s49
      %p55 = scmp.eq.s32.totalorder %s18, 0
      %p56 = por %p54, %p55
      %p57 = scmp.ne.s32.totalorder %s46, %s49
      %p58 = scmp.eq.s32.totalorder %s23, 1
      %p59 = por %p57, %p58
      %p60 = scmp.ne.s32.totalorder %s49, %s50
      %p61 = scmp.eq.s32.totalorder %s23, 0
      %p62 = por %p60, %p61
      %p63 = scmp.ne.s32.totalorder %s49, %s50
      %p64 = scmp.eq.s32.totalorder %s24, 1
      %p65 = por %p63, %p64
      %p67 = scmp.ne.s32.totalorder %s50, %s66
      %p68 = scmp.eq.s32.totalorder %s24, 0
      %p69 = por %p67, %p68
      %s70 = sadd.s32 %s25, %s26
      %p71 = scmp.lt.s32.totalorder %s70, 0
      %s72 = scalar_select %p71, %s70, 0
      %s73 = sadd.s32 %s37, %s33
      %p74 = scmp.lt.s32.totalorder %s73, 0
      %s75 = scalar_select %p74, %s73, 0
      %s76 = ssub.s32 %s72, %s75
      %p77 = scmp.eq.s32.totalorder %s76, 0
      %s79 = sadd.s32 %s78, 1
      %s80 = scalar_select %p77, %s78, %s79
      %p83 = pneg %p77
      %p84 = scmp.eq.s32.totalorder %s18, 1
      %p85 = por %p83, %p84
      %p86 = scmp.ne.s32.totalorder %s78, %s81
      %p87 = scmp.eq.s32.totalorder %s18, 0
      %p88 = por %p86, %p87
      %p89 = scmp.ne.s32.totalorder %s78, %s81
      %p90 = scmp.eq.s32.totalorder %s23, 1
      %p91 = por %p89, %p90
      %p92 = scmp.ne.s32.totalorder %s81, %s82
      %p93 = scmp.eq.s32.totalorder %s23, 0
      %p94 = por %p92, %p93
      %p95 = scmp.ne.s32.totalorder %s81, %s82
      %p96 = scmp.eq.s32.totalorder %s24, 1
      %p97 = por %p95, %p96
      %p99 = scmp.ne.s32.totalorder %s82, %s98
      %p100 = scmp.eq.s32.totalorder %s24, 0
      %p101 = por %p99, %p100
      %s102 = sadd.s32 %s25, %s26
      %p103 = scmp.lt.s32.totalorder %s102, 0
      %s104 = scalar_select %p103, %s102, 0
      %s105 = sadd.s32 %s37, %s33
      %p106 = scmp.lt.s32.totalorder %s105, 0
      %s107 = scalar_select %p106, %s105, 0
      %s108 = ssub.s32 %s104, %s107
      %p109 = scmp.eq.s32.totalorder %s108, 0
      %s111 = sadd.s32 %s110, 1
      %s112 = scalar_select %p109, %s110, %s111
      %p115 = pneg %p109
      %p116 = scmp.eq.s32.totalorder %s18, 1
      %p117 = por %p115, %p116
      %p118 = scmp.ne.s32.totalorder %s110, %s113
      %p119 = scmp.eq.s32.totalorder %s18, 0
      %p120 = por %p118, %p119
      %p121 = scmp.ne.s32.totalorder %s110, %s113
      %p122 = scmp.eq.s32.totalorder %s23, 1
      %p123 = por %p121, %p122
      %p124 = scmp.ne.s32.totalorder %s113, %s114
      %p125 = scmp.eq.s32.totalorder %s23, 0
      %p126 = por %p124, %p125
      %p127 = scmp.ne.s32.totalorder %s113, %s114
      %p128 = scmp.eq.s32.totalorder %s24, 1
      %p129 = por %p127, %p128
      %p131 = scmp.ne.s32.totalorder %s114, %s130
      %p132 = scmp.eq.s32.totalorder %s24, 0
      %p133 = por %p131, %p132
      %s134 = ssub.s32 %s25, %s37
      %p135 = scmp.eq.s32.totalorder %s134, 0
      %s137 = sadd.s32 %s136, 1
      %s138 = scalar_select %p135, %s136, %s137
      %p141 = pneg %p135
      %p142 = scmp.eq.s32.totalorder %s18, 1
      %p143 = por %p141, %p142
      %p144 = scmp.ne.s32.totalorder %s136, %s139
      %p145 = scmp.eq.s32.totalorder %s18, 0
      %p146 = por %p144, %p145
      %p147 = scmp.ne.s32.totalorder %s136, %s139
      %p148 = scmp.eq.s32.totalorder %s23, 1
      %p149 = por %p147, %p148
      %p150 = scmp.ne.s32.totalorder %s139, %s140
      %p151 = scmp.eq.s32.totalorder %s23, 0
      %p152 = por %p150, %p151
      %p153 = scmp.ne.s32.totalorder %s139, %s140
      %p154 = scmp.eq.s32.totalorder %s24, 1
      %p155 = por %p153, %p154
      %p157 = scmp.ne.s32.totalorder %s140, %s156
      %p158 = scmp.eq.s32.totalorder %s24, 0
      %p159 = por %p157, %p158
      %p160 = scmp.le.s32.totalorder 1, %s18
      %p161 = scmp.lt.s32.totalorder %s18, 3
      %p162 = pnand %p160, %p161
      %p163 = pneg %p162
      // Predicated region
      $region9: #{tpu_custom_call.1} parent=5 // pred_check
        _
      $region10: #{tpu_custom_call.1} parent=5 // pred_check_branch
        %165 = sbr.rel (%p162) target = $region12
      $region11: #{tpu_custom_call.1} parent=5 // pred_region
        %s166 = ssub.s32 %s18, 1
      $region12: #{tpu_custom_call.1} parent=5 // pred_fallthru
        _
      %p167 = scmp.lt.s32.totalorder %s18, 2
      // Predicated region
      $region13: #{tpu_custom_call.1} parent=5 // pred_check
        %p168 = pneg %p167
      $region14: #{tpu_custom_call.1} parent=5 // pred_check_branch
        %170 = sbr.rel (%p168) target = $region16
      $region15: #{tpu_custom_call.1} parent=5 // pred_region
        // Predicated region
        $region17: #{tpu_custom_call.1} parent=15 // pred_check
          %p171 = pneg %p56
        $region18: #{tpu_custom_call.1} parent=15 // pred_check_branch
          %173 = sbr.rel (%p171) target = $region20
        $region19: #{tpu_custom_call.1} parent=15 // pred_region
          %s174 = sand.u32 %s46, 1
          %s175 = scalar_lea.sflag [#allocation6], %s174
          %s176 = sand.u32 %s46, 1
          %s177 = smul.addr %s176, 4
          %s178 = scalar_lea.vmem [#allocation5], %s177
          %s179 = sadd.s32 %s25, %s26
          %p180 = scmp.lt.s32.totalorder %s179, 0
          %s181 = scalar_select %p180, %s179, 0
          %s183 = ssub.s32 64, 64
          %184 = vsyncadd %s175, %s183
          %s185 = smul.addr %s181, 64
          %s186 = scalar_lea.hbm %s0, %s185
          %s188 = sshll.u32 %s178, 4
          %s189 = int_to_ptr.vmem [resolvable:$true] %s188
          %191 = dma.hbm_to_vmem [thread:$0]  %s186, 64, %s189, %s175
        $region20: #{tpu_custom_call.1} parent=15 // pred_fallthru
          _
        // Predicated region
        $region21: #{tpu_custom_call.1} parent=15 // pred_check
          %p192 = pneg %p88
        $region22: #{tpu_custom_call.1} parent=15 // pred_check_branch
          %194 = sbr.rel (%p192) target = $region24
        $region23: #{tpu_custom_call.1} parent=15 // pred_region
          %s195 = sand.u32 %s78, 1
          %s196 = scalar_lea.sflag [#allocation9], %s195
          %s197 = sand.u32 %s78, 1
          %s198 = smul.addr %s197, 4
          %s199 = scalar_lea.vmem [#allocation8], %s198
          %s200 = sadd.s32 %s25, %s26
          %p201 = scmp.lt.s32.totalorder %s200, 0
          %s202 = scalar_select %p201, %s200, 0
          %s204 = ssub.s32 64, 64
          %205 = vsyncadd %s196, %s204
          %s206 = smul.addr %s202, 64
          %s207 = scalar_lea.hbm %s1, %s206
          %s209 = sshll.u32 %s199, 4
          %s210 = int_to_ptr.vmem [resolvable:$true] %s209
          %212 = dma.hbm_to_vmem [thread:$0]  %s207, 64, %s210, %s196
        $region24: #{tpu_custom_call.1} parent=15 // pred_fallthru
          _
        // Predicated region
        $region25: #{tpu_custom_call.1} parent=15 // pred_check
          %p213 = pneg %p120
        $region26: #{tpu_custom_call.1} parent=15 // pred_check_branch
          %215 = sbr.rel (%p213) target = $region28
        $region27: #{tpu_custom_call.1} parent=15 // pred_region
          %s216 = sadd.s32 %s25, %s26
          %p217 = scmp.lt.s32.totalorder %s216, 0
          %s218 = scalar_select %p217, %s216, 0
          %p219 = scmp.lt.s32.totalorder %s218, 0
          %s220 = scalar_select %p219, %s218, 0
          %s221 = smul.addr %s220, 4
          %s222 = scalar_lea.vmem %s2, %s221
          %s223 = sadd.s32 %s25, %s26
          %p224 = scmp.lt.s32.totalorder %s223, 0
          %s225 = scalar_select %p224, %s223, 0
        $region28: #{tpu_custom_call.1} parent=15 // pred_fallthru
          _
      $region16: #{tpu_custom_call.1} parent=5 // pred_fallthru
        _
      %p226 = scmp.le.s32.totalorder 1, %s18
      %p227 = scmp.lt.s32.totalorder %s18, 3
      %p228 = pnand %p226, %p227
      %p229 = pneg %p228
      // Predicated region
      $region29: #{tpu_custom_call.1} parent=5 // pred_check
        _
      $region30: #{tpu_custom_call.1} parent=5 // pred_check_branch
        %231 = sbr.rel (%p228) target = $region32
      $region31: #{tpu_custom_call.1} parent=5 // pred_region
        %s232 = ssub.s32 %s18, 1
        %s233 = sand.u32 %s49, 1
        %s234 = scalar_lea.sflag [#allocation6], %s233
        %s235 = sand.u32 %s49, 1
        %s236 = smul.addr %s235, 4
        %s237 = scalar_lea.vmem [#allocation5], %s236
        // Predicated region
        $region33: #{tpu_custom_call.1} parent=31 // pred_check
          %p238 = pneg %p62
        $region34: #{tpu_custom_call.1} parent=31 // pred_check_branch
          %240 = sbr.rel (%p238) target = $region36
        $region35: #{tpu_custom_call.1} parent=31 // pred_region
          %241 = dma.done %s234, 64
        $region36: #{tpu_custom_call.1} parent=31 // pred_fallthru
          _
        %s242 = sand.u32 %s81, 1
        %s243 = scalar_lea.sflag [#allocation9], %s242
        %s244 = sand.u32 %s81, 1
        %s245 = smul.addr %s244, 4
        %s246 = scalar_lea.vmem [#allocation8], %s245
        // Predicated region
        $region37: #{tpu_custom_call.1} parent=31 // pred_check
          %p247 = pneg %p94
        $region38: #{tpu_custom_call.1} parent=31 // pred_check_branch
          %249 = sbr.rel (%p247) target = $region40
        $region39: #{tpu_custom_call.1} parent=31 // pred_region
          %250 = dma.done %s243, 64
        $region40: #{tpu_custom_call.1} parent=31 // pred_fallthru
          _
        %s251 = sand.u32 %s49, 1
        %s252 = scalar_lea.sflag [#allocation6], %s251
        %s253 = sand.u32 %s49, 1
        %s254 = smul.addr %s253, 4
        %s255 = scalar_lea.vmem [#allocation5], %s254
        %p256 = pneg %p62
        %p257 = pneg %p59
        %s258 = sand.u32 %s81, 1
        %s259 = scalar_lea.sflag [#allocation9], %s258
        %s260 = sand.u32 %s81, 1
        %s261 = smul.addr %s260, 4
        %s262 = scalar_lea.vmem [#allocation8], %s261
        %p263 = pneg %p94
        %p264 = pneg %p91
        %s265 = sadd.s32 %s27, %s28
        %p266 = scmp.lt.s32.totalorder %s265, 0
        %s267 = scalar_select %p266, %s265, 0
        %p268 = scmp.lt.s32.totalorder %s267, 0
        %s269 = scalar_select %p268, %s267, 0
        %s270 = smul.addr %s269, 4
        %s271 = scalar_lea.vmem %s2, %s270
        %p272 = pneg %p126
        %p273 = pneg %p123
        %p274 = pneg %p152
        %p275 = pneg %p149
        %s276 = sand.u32 %s139, 1
        %s277 = scalar_lea.sflag [#allocation7], %s276
        %s278 = sand.u32 %s139, 1
        %s279 = smul.addr %s278, 8
        %s280 = scalar_lea.vmem [#allocation10], %s279
        %s281 = sadd.s32 %s27, %s28
        %p282 = scmp.lt.s32.totalorder %s281, 0
        %s283 = scalar_select %p282, %s281, 0
        %s284 = sadd.s32 %s27, %s28
        %p285 = scmp.lt.s32.totalorder %s284, 0
        %s286 = scalar_select %p285, %s284, 0
        %s287 = sadd.s32 %s27, %s28
        %p288 = scmp.lt.s32.totalorder %s287, 0
        %s289 = scalar_select %p288, %s287, 0
        %p290 = scmp.lt.s32.totalorder %s289, 0
        %s291 = scalar_select %p290, %s289, 0
        %s292 = smul.addr %s291, 4
        %s293 = scalar_lea.vmem %s2, %s292
        %s294 = sadd.s32 %s27, %s28
        %p295 = scmp.lt.s32.totalorder %s294, 0
        %s296 = scalar_select %p295, %s294, 0
        %s297 = sadd.s32 %s27, %s28
        %p298 = scmp.eq.s32.totalorder %s28, 0
        // Predicated region
        $region41: #{tpu_custom_call.1} parent=31 // pred_check
          %p299 = pneg %p298
        $region42: #{tpu_custom_call.1} parent=31 // pred_check_branch
          %301 = sbr.rel (%p299) target = $region44
        $region43: #{tpu_custom_call.1} parent=31 // pred_region
          %302 = vst [vmem:[#allocation2] sm:$0xf] 0.0
          %303 = vst [vmem:[#allocation3] sm:$0xf] 0.0
          %304 = vst [vmem:[#allocation4] sm:$0xf] 0.0
        $region44: #{tpu_custom_call.1} parent=31 // pred_fallthru
          _
        %v305 = vld [vmem:[%s237] sm:$0xf]
        %v306 = vld [vmem:[%s246] sm:$0xf]
        %v307 = vld [vmem:[%s293] sm:$0xf]
        %v308 = vsub.f32 1.0, %v305
        %v309 = vmax.f32 %v308, 0.0
        %v310 = vadd.f32 %v307, 1.0
        %v311 = vmax.f32 %v310, 0.0
        %s312 = sadd.s32 %s297, 1
        %s313 = smul.u32 %s312, 512
        %p314 = scmp.gt.s32.totalorder %s313, 512
        %p315 = scmp.le.s32.totalorder %s313, 512
        // Predicated region
        $region45: #{tpu_custom_call.1} parent=31 // pred_check
          %p316 = pneg %p315
        $region46: #{tpu_custom_call.1} parent=31 // pred_check_branch
          %318 = sbr.rel (%p316) target = $region48
        $region47: #{tpu_custom_call.1} parent=31 // pred_region
          %v319 = vld [vmem:[#allocation2] sm:$0xf]
          %v320 = vadd.f32 %v319, %v309
          %321 = vst [vmem:[#allocation2] sm:$0xf] %v320
          %v322 = vld [vmem:[#allocation3] sm:$0xf]
          %v323 = vadd.f32 %v322, %v311
          %324 = vst [vmem:[#allocation3] sm:$0xf] %v323
          %v325 = vld [vmem:[#allocation4] sm:$0xf]
          %v326 = vadd.f32 %v325, %v306
          %327 = vst [vmem:[#allocation4] sm:$0xf] %v326
        $region48: #{tpu_custom_call.1} parent=31 // pred_fallthru
          _
        // Predicated region
        $region49: #{tpu_custom_call.1} parent=31 // pred_check
          %p328 = pneg %p314
        $region50: #{tpu_custom_call.1} parent=31 // pred_check_branch
          %330 = sbr.rel (%p328) target = $region52
        $region51: #{tpu_custom_call.1} parent=31 // pred_region
          %v331 = vlaneseq
          %v332 = vshrl.u32 %v331, 7
          %v333 = vlaneseq
          %v334 = vand.u32 %v333, 127
          %s335 = smul.u32 %s297, 512
          %v336 = vmul.u32 %v332, 128
          %v337 = vstv %s335
          %v338 = vadd.s32 %v337, %v336
          %v339 = vadd.s32 %v338, %v334
          %vm340 = vcmp.lt.s32.totalorder %v339, 512
          %v341 = vld [vmem:[#allocation2] sm:$0xf]
          %v342 = vsel %vm340, %v309, 0.0
          %v343 = vadd.f32 %v341, %v342
          %344 = vst [vmem:[#allocation2] sm:$0xf] %v343
          %v345 = vld [vmem:[#allocation3] sm:$0xf]
          %v346 = vsel %vm340, %v311, 0.0
          %v347 = vadd.f32 %v345, %v346
          %348 = vst [vmem:[#allocation3] sm:$0xf] %v347
          %v349 = vld [vmem:[#allocation4] sm:$0xf]
          %v350 = vsel %vm340, %v306, 0.0
          %v351 = vadd.f32 %v349, %v350
          %352 = vst [vmem:[#allocation4] sm:$0xf] %v351
        $region52: #{tpu_custom_call.1} parent=31 // pred_fallthru
          _
        // Predicated region
        $region53: #{tpu_custom_call.1} parent=31 // pred_check
          %p353 = pneg %p298
        $region54: #{tpu_custom_call.1} parent=31 // pred_check_branch
          %355 = sbr.rel (%p353) target = $region56
        $region55: #{tpu_custom_call.1} parent=31 // pred_region
          %v356 = vld [vmem:[#allocation2] sm:$0xf]
          %vm357 = vcmask 1043456
          %v358 = vsel %vm357, %v356, 0.0
          %359 = vadd.xlane.f32.xlu0 %v358
          %v360 = vpop.xlane.xlu0 %359
          %v361 = vrot.slane %v360, 4
          %v362 = vadd.f32 %v360, %v361
          %v363 = vrot.slane %v362, 2
          %v364 = vadd.f32 %v362, %v363
          %v365 = vrot.slane %v364, 1
          %v366 = vadd.f32 %v364, %v365
          %s367 = vtos %v366
          %s368 = smul.f32 %s367, 0.001953125
          %v369 = vld [vmem:[#allocation3] sm:$0xf]
          %v370 = vsel %vm357, %v369, 0.0
          %371 = vadd.xlane.f32.xlu0 %v370
          %v372 = vpop.xlane.xlu0 %371
          %v373 = vrot.slane %v372, 4
          %v374 = vadd.f32 %v372, %v373
          %v375 = vrot.slane %v374, 2
          %v376 = vadd.f32 %v374, %v375
          %v377 = vrot.slane %v376, 1
          %v378 = vadd.f32 %v376, %v377
          %s379 = vtos %v378
          %s380 = smul.f32 %s379, 0.001953125
          %v381 = vld [vmem:[#allocation4] sm:$0xf]
          %v382 = vsel %vm357, %v381, 0.0
          %383 = vadd.xlane.f32.xlu0 %v382
          %v384 = vpop.xlane.xlu0 %383
          %v385 = vrot.slane %v384, 4
          %v386 = vadd.f32 %v384, %v385
          %v387 = vrot.slane %v386, 2
          %v388 = vadd.f32 %v386, %v387
          %v389 = vrot.slane %v388, 1
          %v390 = vadd.f32 %v388, %v389
          %s391 = vtos %v390
          %s392 = smul.f32 %s391, 0.001953125
          %s393 = ssub.f32 0.0, %s392
          %s394 = smul.f32 %s393, 0.1
          %s395 = sadd.f32 %s368, %s380
          %s396 = sadd.f32 %s395, %s394
          %s397 = smul.f32 %s396, 0.5
          %v398 = vlaneseq
          %v399 = vand.u32 %v398, 127
          %vm400 = vcmp.eq.s32.totalorder %v399, 0
          %v401 = vstv %s397
          %v402 = vsel %vm400, %v401, 0.0
          %vm403 = vcmp.eq.s32.totalorder %v399, 1
          %v404 = vstv %s368
          %v405 = vsel %vm403, %v404, 0.0
          %v406 = vadd.f32 %v402, %v405
          %vm407 = vcmp.eq.s32.totalorder %v399, 2
          %v408 = vstv %s380
          %v409 = vsel %vm407, %v408, 0.0
          %v410 = vadd.f32 %v406, %v409
          %vm411 = vcmp.eq.s32.totalorder %v399, 3
          %v412 = vstv %s394
          %v413 = vsel %vm411, %v412, 0.0
          %v414 = vadd.f32 %v410, %v413
          %415 = vst [vmem:[%s280] sm:$0xff] %v414
        $region56: #{tpu_custom_call.1} parent=31 // pred_fallthru
          _
        %s416 = sand.u32 %s139, 1
        %s417 = scalar_lea.sflag [#allocation7], %s416
        %s418 = sand.u32 %s139, 1
        %s419 = smul.addr %s418, 8
        %s420 = scalar_lea.vmem [#allocation10], %s419
        // Predicated region
        $region57: #{tpu_custom_call.1} parent=31 // pred_check
          %p421 = pneg %p149
        $region58: #{tpu_custom_call.1} parent=31 // pred_check_branch
          %423 = sbr.rel (%p421) target = $region60
        $region59: #{tpu_custom_call.1} parent=31 // pred_region
          %s425 = ssub.s32 128, 128
          %426 = vsyncadd %s417, %s425
          %s427 = smul.addr %s27, 128
          %s428 = scalar_lea.hbm %s3, %s427
          %s430 = sshll.u32 %s420, 4
          %s431 = int_to_ptr.vmem [resolvable:$true] %s430
          %433 = dma.vmem_to_hbm [thread:$0]  %s431, 128, %s428, %s417
        $region60: #{tpu_custom_call.1} parent=31 // pred_fallthru
          _
      $region32: #{tpu_custom_call.1} parent=5 // pred_fallthru
        _
      %p434 = scmp.le.s32.totalorder 2, %s18
      // Predicated region
      $region61: #{tpu_custom_call.1} parent=5 // pred_check
        %p435 = pneg %p434
      $region62: #{tpu_custom_call.1} parent=5 // pred_check_branch
        %437 = sbr.rel (%p435) target = $region64
      $region63: #{tpu_custom_call.1} parent=5 // pred_region
        %s438 = ssub.s32 %s18, 2
        // Predicated region
        $region65: #{tpu_custom_call.1} parent=63 // pred_check
          %p439 = pneg %p155
        $region66: #{tpu_custom_call.1} parent=63 // pred_check_branch
          %441 = sbr.rel (%p439) target = $region68
        $region67: #{tpu_custom_call.1} parent=63 // pred_region
          %s442 = sand.u32 %s140, 1
          %s443 = scalar_lea.sflag [#allocation7], %s442
          %s444 = sand.u32 %s140, 1
          %s445 = smul.addr %s444, 8
          %s446 = scalar_lea.vmem [#allocation10], %s445
          %447 = dma.done %s443, 128
        $region68: #{tpu_custom_call.1} parent=63 // pred_fallthru
          _
      $region64: #{tpu_custom_call.1} parent=5 // pred_fallthru
        _
    $region6: #{tpu_custom_call.1} parent=1 // loop_footer
      %s22 = sadd.s32 1, %s18
    $region7: #{tpu_custom_call.1} parent=1 // loop_footer_branch
      %17 = sbr.rel target = $region3
    $region8: #{tpu_custom_call.1} parent=1 // loop_exit
      _
    %448 = vsyncpa [#allocation6], 1
    %s449 = scalar_lea.sflag [#allocation6], 1
    %450 = vsyncpa %s449, 1
    %451 = vsyncpa [#allocation9], 1
    %s452 = scalar_lea.sflag [#allocation9], 1
    %453 = vsyncpa %s452, 1
    %454 = vsyncpa [#allocation7], 1
    %s455 = scalar_lea.sflag [#allocation7], 1
    %456 = vsyncpa %s455, 1

</llo_original>
